<compile_context>
chip_gen: v7x
topology: tpu7x:2x2x1
jax: 0.10.0
libtpu: 0.0.40
codegen_flags: <defaults>
</compile_context>

<pallas_src>
import functools

import jax
import jax.numpy as jnp
from jax import lax
from jax.experimental import pallas as pl
from jax.experimental.pallas import tpu as pltpu

_LANE = 128


def _round_up(x: int, m: int) -> int:
    return ((x + m - 1) // m) * m


def _bpr_kernel(outputs_ref, idx_ref, out_ref, *, reduction: str, n_pairs: int,
                nc: int, n_chunks: int, tiles_per_core: int, mask_tail: bool):
    """One pair-tile of BPR loss.

    outputs_ref: (1, N_pad) f32 candidate scores, resident across the grid.
    idx_ref:     (2, TP)    i32, row 0 = positive idx, row 1 = negative idx.
    out_ref:     (1, TP//128, 128) f32 loss tile      for reduction == 'none'
                 (1, 8, 128)       f32 partial accum  for 'sum' / 'mean'.
    """
    tp = idx_ref.shape[1]

    pos = idx_ref[0:1, :]                                   # (1, TP)
    neg = idx_ref[1:2, :]                                   # (1, TP)

    # Loop-invariant candidate-row iota kept at (NC, 1): the compares broadcast
    # instead of materialising a full (NC, TP) int32 iota.
    row = lax.broadcasted_iota(jnp.int32, (nc, 1), 0)

    # Gather realised as an MXU contraction against a +/-1 one-hot selector,
    # chunked along the candidate axis so transients do not scale with N.
    # TODO(synk): switch to a native in-kernel dynamic lane-gather (jnp.take)
    # once Mosaic exposes a general lowering for it.
    if n_chunks == 1:
        sel = ((row == pos).astype(jnp.int32) -
               (row == neg).astype(jnp.int32)).astype(jnp.float32)
        diff = jnp.dot(outputs_ref[...], sel,
                       preferred_element_type=jnp.float32)   # (1, TP)
    else:
        def _chunk(c, acc):
            off = c * nc
            base = pl.multiple_of(off, nc)
            sel = ((row == (pos - off)).astype(jnp.int32) -
                   (row == (neg - off)).astype(jnp.int32)).astype(jnp.float32)
            scores = outputs_ref[:, pl.ds(base, nc)]          # (1, NC)
            return acc + jnp.dot(scores, sel,
                                 preferred_element_type=jnp.float32)
        diff = lax.fori_loop(0, n_chunks, _chunk,
                             jnp.zeros((1, tp), jnp.float32))

    # -logsigmoid(x) = softplus(-x), numerically stable.
    loss = jnp.maximum(-diff, 0.0) + jnp.log1p(jnp.exp(-jnp.abs(diff)))

    if reduction == "none":
        tile_idx = pl.program_id(0)
    else:
        tile_idx = pl.program_id(0) * tiles_per_core + pl.program_id(1)

    if reduction != "none" or mask_tail:
        lane = lax.broadcasted_iota(jnp.int32, (1, tp), 1)
        loss = jnp.where(tile_idx * tp + lane < n_pairs, loss, 0.0)

    if reduction == "none":
        # Sublane+lane dense store instead of a (1, TP) single-sublane row.
        out_ref[...] = loss.reshape(1, tp // _LANE, _LANE)
    else:
        @pl.when(pl.program_id(1) == 0)
        def _init():
            out_ref[...] = jnp.zeros_like(out_ref)

        # Per-core running scalar sum broadcast over the (8, 128) block; the
        # cross-core combine and 1/P scale happen in the wrapper.
        out_ref[...] += jnp.sum(loss)


def bpr_loss(outputs, mask, reduction: str = "mean"):
    """Bayesian Personalised Ranking loss (Pallas TPU kernel)."""
    if reduction not in ("none", "mean", "sum"):
        raise ValueError(f"Unknown reduction {reduction}")

    N = int(outputs.shape[0])
    P = int(mask.shape[0])

    # --- candidate (contraction) axis: 256-aligned, chunked at <=1024 rows ---
    nc = min(1024, _round_up(max(N, 256), 256))
    n_pad = _round_up(N, nc)
    n_chunks = n_pad // nc

    # --- pair axis: lane-dense tile TP from a VMEM transient budget ----------
    transient_budget = 12 << 20              # ~4 live (NC, TP) f32 slabs
    tp = (transient_budget // (16 * nc)) // _LANE * _LANE
    tp = max(_LANE, min(4096, tp))
    tp = min(tp, _round_up(P, _LANE))
    tiles = -(-P // tp)                      # ceil(P / tp)

    if reduction == "none":
        num_cores = 1
        tiles_total = tiles
        tiles_per_core = tiles
    else:
        # Split the pair axis across 2 TensorCores (2x on v7x; harmless serial
        # loop on single-TC v5e/v6e) with per-core partial accumulators.
        num_cores = 2 if tiles >= 2 else 1
        tiles_total = _round_up(tiles, num_cores)
        tiles_per_core = tiles_total // num_cores
    p_pad = tiles_total * tp
    mask_tail = p_pad > P

    # --- host-side input prep -------------------------------------------------
    scores = outputs.astype(jnp.float32)
    if n_pad != N:
        scores = jnp.pad(scores, (0, n_pad - N))
    outputs_row = scores.reshape(1, n_pad)

    # Single contiguous (2, P_pad) index array (lane-dense, no strided columns).
    # TODO(synk): accept a pre-transposed / pre-padded (2, P) index layout from
    # upstream to avoid this extra HBM pass on the hot path (matters on v5e).
    idx = jnp.transpose(mask.astype(jnp.int32))
    if p_pad != P:
        idx = jnp.pad(idx, ((0, 0), (0, p_pad - P)))

    # --- VMEM budget ----------------------------------------------------------
    try:
        vmem_cap = int(getattr(pltpu.get_tpu_info(), "vmem_capacity_bytes",
                               64 << 20))
    except Exception:
        vmem_cap = 64 << 20
    vmem_est = (20 * nc * tp                     # selector/compare transients
                + 2 * (2 * tp * 4)               # double-buffered index tiles
                + 2 * (n_pad * 4)                # resident scores row
                + 2 * (tp * 4 + 8 * _LANE * 4)   # output tile / accumulator
                + (2 << 20))                     # compiler-scratch margin
    vmem_limit = int(min(max(vmem_est, 16 << 20), int(0.6 * vmem_cap)))

    kernel = functools.partial(
        _bpr_kernel, reduction=reduction, n_pairs=P, nc=nc, n_chunks=n_chunks,
        tiles_per_core=tiles_per_core, mask_tail=mask_tail)

    if reduction == "none":
        grid = (tiles_total,)
        in_specs = [
            pl.BlockSpec((1, n_pad), lambda i: (0, 0)),      # scores: resident
            pl.BlockSpec((2, tp), lambda i: (0, i)),          # index tile
        ]
        out_shape = jax.ShapeDtypeStruct((tiles_total, tp // _LANE, _LANE),
                                         jnp.float32)
        out_specs = pl.BlockSpec((1, tp // _LANE, _LANE), lambda i: (i, 0, 0))
        dim_sem = ("parallel",)
    else:
        grid = (num_cores, tiles_per_core)
        in_specs = [
            pl.BlockSpec((1, n_pad), lambda c, i: (0, 0)),
            pl.BlockSpec((2, tp),
                         lambda c, i: (0, c * tiles_per_core + i)),
        ]
        out_shape = jax.ShapeDtypeStruct((num_cores, 8, _LANE), jnp.float32)
        out_specs = pl.BlockSpec((1, 8, _LANE), lambda c, i: (c, 0, 0))
        dim_sem = ("parallel", "arbitrary")

    res = pl.pallas_call(
        kernel,
        out_shape=out_shape,
        grid=grid,
        in_specs=in_specs,
        out_specs=out_specs,
        compiler_params=pltpu.CompilerParams(
            dimension_semantics=dim_sem,
            vmem_limit_bytes=vmem_limit,
        ),
    )(outputs_row, idx)

    if reduction == "none":
        return res.reshape(-1)[:P]
    total = jnp.sum(res[:, 0, 0])          # combine per-core partials
    if reduction == "mean":
        total = total / P                  # scale moved to the wrapper
    return total


def _bpr_ref(outputs, mask, reduction="mean"):
    """Pure-JAX reference matching the PyTorch module."""
    diff = outputs[mask[:, 0]] - outputs[mask[:, 1]]
    loss = -jax.nn.log_sigmoid(diff)
    if reduction == "none":
        return loss
    if reduction == "sum":
        return jnp.sum(loss)
    return jnp.mean(loss)


if __name__ == "__main__":
    key = jax.random.PRNGKey(0)
    k_out, k_pos, k_neg = jax.random.split(key, 3)

    # Small case (single candidate chunk, single pair tile).
    N, P = 16, 8
    outputs = jax.random.normal(k_out, (N,), dtype=jnp.float32)
    pos_idx = jax.random.randint(k_pos, (P,), 0, N, dtype=jnp.int32)
    neg_idx = jax.random.randint(k_neg, (P,), 0, N, dtype=jnp.int32)
    mask = jnp.stack([pos_idx, neg_idx], axis=1)           # (P, 2) index pairs

    for red in ("mean", "sum", "none"):
        got = jax.block_until_ready(bpr_loss(outputs, mask, red))
        want = _bpr_ref(outputs, mask, red)
        assert jnp.allclose(got, want, atol=1e-5, rtol=1e-5), red

    # Larger case exercising candidate-axis chunking, multi-tile pairs and the
    # two-core partial-sum reduction path.
    k_out2, k_pos2, k_neg2 = jax.random.split(jax.random.PRNGKey(1), 3)
    N2, P2 = 1500, 1200
    outputs2 = jax.random.normal(k_out2, (N2,), dtype=jnp.float32)
    mask2 = jnp.stack(
        [jax.random.randint(k_pos2, (P2,), 0, N2, dtype=jnp.int32),
         jax.random.randint(k_neg2, (P2,), 0, N2, dtype=jnp.int32)], axis=1)
    for red in ("mean", "sum", "none"):
        got = jax.block_until_ready(bpr_loss(outputs2, mask2, red))
        want = _bpr_ref(outputs2, mask2, red)
        assert jnp.allclose(got, want, atol=1e-4, rtol=1e-4), red

    print("KERNEL_OK")
</pallas_src>

<mosaic_0001>
module attributes {stable_mosaic.version = 11 : i64} {
  func.func @_bpr_kernel(%arg0: i32, %arg1: i32, %arg2: memref<1x256xf32, #tpu.memory_space<vmem>>, %arg3: memref<2x128xi32, #tpu.memory_space<vmem>>, %arg4: memref<1x8x128xf32, #tpu.memory_space<vmem>>) attributes {dimension_semantics = [#tpu.dimension_semantics<parallel>, #tpu.dimension_semantics<arbitrary>], iteration_bounds = array<i64: 1, 1>, scalar_prefetch = 0 : i64, scratch_operands = 0 : i64, tpu.core_type = #tpu.core_type<tc>, window_params = [{pipeline_mode = #tpu.pipeline_mode<synchronous>, transform_indices = @transform_0, window_bounds = array<i64: 1, 256>}, {transform_indices = @transform_1, window_bounds = array<i64: 2, 128>}, {transform_indices = @transform_2, window_bounds = array<i64: 1, 8, 128>}]} {
    %c0 = arith.constant 0 : index
    %c0_0 = arith.constant 0 : index
    %0 = vector.load %arg3[%c0, %c0_0] : memref<2x128xi32, #tpu.memory_space<vmem>>, vector<1x128xi32>
    %c1 = arith.constant 1 : index
    %c0_1 = arith.constant 0 : index
    %1 = vector.load %arg3[%c1, %c0_1] : memref<2x128xi32, #tpu.memory_space<vmem>>, vector<1x128xi32>
    %2 = tpu.iota {dimensions = array<i32: 0>} : vector<256x1xi32>
    %3 = vector.broadcast %2 : vector<256x1xi32> to vector<256x128xi32>
    %4 = vector.broadcast %0 : vector<1x128xi32> to vector<256x128xi32>
    %5 = arith.cmpi eq, %3, %4 : vector<256x128xi32>
    %6 = arith.extui %5 : vector<256x128xi1> to vector<256x128xi32>
    %7 = vector.broadcast %2 : vector<256x1xi32> to vector<256x128xi32>
    %8 = vector.broadcast %1 : vector<1x128xi32> to vector<256x128xi32>
    %9 = arith.cmpi eq, %7, %8 : vector<256x128xi32>
    %10 = arith.extui %9 : vector<256x128xi1> to vector<256x128xi32>
    %11 = arith.subi %6, %10 : vector<256x128xi32>
    %12 = arith.sitofp %11 : vector<256x128xi32> to vector<256x128xf32>
    %c0_2 = arith.constant 0 : index
    %c0_3 = arith.constant 0 : index
    %13 = vector.load %arg2[%c0_2, %c0_3] : memref<1x256xf32, #tpu.memory_space<vmem>>, vector<1x256xf32>
    %cst = arith.constant dense<0.000000e+00> : vector<1x128xf32>
    %14 = tpu.matmul %13, %12, %cst {dimension_numbers = #tpu.dot_dimension_numbers<[1], [0], [0], [1], [0, 0, 1, 1], [], []>} : vector<1x256xf32>, vector<256x128xf32>, vector<1x128xf32> -> vector<1x128xf32>
    %cst_4 = arith.constant 0.000000e+00 : f32
    %15 = vector.broadcast %cst_4 : f32 to vector<1x128xf32>
    %16 = arith.subf %15, %14 : vector<1x128xf32>
    %cst_5 = arith.constant 0.000000e+00 : f32
    %17 = vector.broadcast %cst_5 : f32 to vector<1x128xf32>
    %18 = arith.maximumf %16, %17 : vector<1x128xf32>
    %19 = math.absf %14 : vector<1x128xf32>
    %cst_6 = arith.constant 0.000000e+00 : f32
    %20 = vector.broadcast %cst_6 : f32 to vector<1x128xf32>
    %21 = arith.subf %20, %19 : vector<1x128xf32>
    %22 = math.exp %21 : vector<1x128xf32>
    %23 = math.log1p %22 : vector<1x128xf32>
    %24 = arith.addf %18, %23 : vector<1x128xf32>
    %c1_i32 = arith.constant 1 : i32
    %25 = arith.muli %arg0, %c1_i32 : i32
    %26 = arith.addi %25, %arg1 : i32
    %27 = tpu.iota {dimensions = array<i32: 1>} : vector<1x128xi32>
    %c128_i32 = arith.constant 128 : i32
    %28 = arith.muli %26, %c128_i32 : i32
    %29 = vector.broadcast %28 : i32 to vector<1x128xi32>
    %30 = arith.addi %29, %27 : vector<1x128xi32>
    %c8_i32 = arith.constant 8 : i32
    %31 = vector.broadcast %c8_i32 : i32 to vector<1x128xi32>
    %32 = arith.cmpi slt, %30, %31 : vector<1x128xi32>
    %cst_7 = arith.constant 0.000000e+00 : f32
    %33 = vector.broadcast %cst_7 : f32 to vector<1x128xf32>
    %34 = arith.select %32, %24, %33 : vector<1x128xi1>, vector<1x128xf32>
    %c0_i32 = arith.constant 0 : i32
    %35 = arith.cmpi eq, %arg1, %c0_i32 : i32
    %36 = arith.extui %35 : i1 to i32
    %c0_i32_8 = arith.constant 0 : i32
    %37 = arith.cmpi ne, %36, %c0_i32_8 : i32
    scf.if %37 {
      %cst_16 = arith.constant 0.000000e+00 : f32
      %46 = vector.broadcast %cst_16 : f32 to vector<1x8x128xf32>
      %c0_17 = arith.constant 0 : index
      %c0_18 = arith.constant 0 : index
      %c0_19 = arith.constant 0 : index
      %47 = vector.load %arg4[%c0_17, %c0_18, %c0_19] : memref<1x8x128xf32, #tpu.memory_space<vmem>>, vector<1x8x128xf32>
      tpu.vector_store %arg4[%c0_17, %c0_18, %c0_19], %46 {strides = array<i32>} : memref<1x8x128xf32, #tpu.memory_space<vmem>>, vector<1x8x128xf32>,
    } else {
    }
    %c0_9 = arith.constant 0 : index
    %c0_10 = arith.constant 0 : index
    %c0_11 = arith.constant 0 : index
    %38 = vector.load %arg4[%c0_9, %c0_10, %c0_11] : memref<1x8x128xf32, #tpu.memory_space<vmem>>, vector<1x8x128xf32>
    %39 = vector.shape_cast %34 : vector<1x128xf32> to vector<1x1x128xf32>
    %cst_12 = arith.constant dense<0.000000e+00> : vector<1xf32>
    %40 = vector.multi_reduction <add>, %39, %cst_12 [1, 2] : vector<1x1x128xf32> to vector<1xf32>
    %41 = vector.shape_cast %40 : vector<1xf32> to vector<1x1x1xf32>
    %42 = vector.extract %41[0, 0, 0] : f32 from vector<1x1x1xf32>
    %43 = vector.broadcast %42 : f32 to vector<1x8x128xf32>
    %44 = arith.addf %38, %43 : vector<1x8x128xf32>
    %c0_13 = arith.constant 0 : index
    %c0_14 = arith.constant 0 : index
    %c0_15 = arith.constant 0 : index
    %45 = vector.load %arg4[%c0_13, %c0_14, %c0_15] : memref<1x8x128xf32, #tpu.memory_space<vmem>>, vector<1x8x128xf32>
    tpu.vector_store %arg4[%c0_13, %c0_14, %c0_15], %44 {strides = array<i32>} : memref<1x8x128xf32, #tpu.memory_space<vmem>>, vector<1x8x128xf32>,
    return
  }
  func.func @transform_0(%arg0: i32, %arg1: i32) -> (i32, i32) {
    %c0_i32 = arith.constant 0 : i32
    %c0_i32_0 = arith.constant 0 : i32
    %c0_i32_1 = arith.constant 0 : i32
    return %c0_i32, %c0_i32_0 : i32, i32
  }
  func.func @transform_1(%arg0: i32, %arg1: i32) -> (i32, i32) {
    %c1_i32 = arith.constant 1 : i32
    %0 = arith.muli %arg0, %c1_i32 : i32
    %1 = arith.addi %0, %arg1 : i32
    %c0_i32 = arith.constant 0 : i32
    %c0_i32_0 = arith.constant 0 : i32
    return %c0_i32, %1 : i32, i32
  }
  func.func @transform_2(%arg0: i32, %arg1: i32) -> (i32, i32, i32) {
    %c0_i32 = arith.constant 0 : i32
    %c0_i32_0 = arith.constant 0 : i32
    %c0_i32_1 = arith.constant 0 : i32
    return %arg0, %c0_i32, %c0_i32_0 : i32, i32, i32
  }
}

</mosaic_0001>

<llo_original>
// kernel: tpu_custom_call.1
$region0: #{tpu_custom_call.1}
  #allocation0 [shape = 'u32[]', space=smem, size = 0x4, offset = 0x4, fixed_abs, tag = 'smem constant byte address 0x4 - core index']
  #allocation1 [shape = 'u32[144,128]{1,0:T(1,128)}', space=vmem, size = 0x12000, scoped, tag = 'internal scratch']
  %s0 = inlined_call_operand.hbm [shape: f32[1,256], index: 0, kind: input, shape index: {}]
  %s1 = inlined_call_operand.vmem [shape: s32[2,128], index: 1, kind: input, shape index: {}]
  %s2 = inlined_call_operand.hbm [shape: f32[1,8,128], index: 2, kind: output, shape index: {}]
  %s3 = sld [smem:[#allocation0]]
  $region26: #{tpu_custom_call.1} parent=0
    _
  %s5 = ssub.s32 1, %s3
  %s6 = scalar_select 0, %s5, %s3
  $region1: #{tpu_custom_call.1} parent=0
    #allocation2 [shape = 'u8[1024]{0}', space=vmem, size = 0x400, scoped, tag = 'input window, operand 0, single buffered']
    #allocation3 [shape = 's32[1]{0}', space=sflag, size = 0x4, scoped, tag = 'scoped memory for tpu_custom_call.1']
    #allocation4 [shape = 's32[1]{0}', space=sflag, size = 0x4, scoped, tag = 'scoped memory for tpu_custom_call.1']
    #allocation5 [shape = 'u8[4096]{0}', space=vmem, size = 0x1000, scoped, tag = 'output window, operand 0, single buffered']
    %7 = vsyncpa [#allocation3], 0
    %8 = vsyncpa [#allocation4], 0
    // Predicated region
    $region2: #{tpu_custom_call.1} parent=1 // pred_check
      _
    $region3: #{tpu_custom_call.1} parent=1 // pred_check_branch
      %10 = sbr.rel (0) target = $region5
    $region4: #{tpu_custom_call.1} parent=1 // pred_region
      %s12 = ssub.s32 32, 32
      %13 = vsyncadd [#allocation3], %s12
      %s15 = sshll.u32 [#allocation2], 4
      %s16 = int_to_ptr.vmem [resolvable:$true] %s15
      %18 = dma.hbm_to_vmem [thread:$0]  %s0, 32, %s16, [#allocation3]
    $region5: #{tpu_custom_call.1} parent=1 // pred_fallthru
      _
    // Predicated region
    $region6: #{tpu_custom_call.1} parent=1 // pred_check
      _
    $region7: #{tpu_custom_call.1} parent=1 // pred_check_branch
      %20 = sbr.rel (0) target = $region9
    $region8: #{tpu_custom_call.1} parent=1 // pred_region
      %s21 = sadd.s32 0, 0
      %p22 = scmp.lt.s32.totalorder %s21, 0
      %s23 = scalar_select %p22, %s21, 0
      %s24 = smul.addr %s23, 2
      %s25 = scalar_lea.vmem %s1, %s24
      %s26 = sadd.s32 0, 0
    $region9: #{tpu_custom_call.1} parent=1 // pred_fallthru
      _
    // Predicated region
    $region10: #{tpu_custom_call.1} parent=1 // pred_check
      _
    $region11: #{tpu_custom_call.1} parent=1 // pred_check_branch
      %28 = sbr.rel (0) target = $region13
    $region12: #{tpu_custom_call.1} parent=1 // pred_region
      %29 = dma.done [#allocation3], 32
    $region13: #{tpu_custom_call.1} parent=1 // pred_fallthru
      _
    %s30 = sadd.s32 0, 0
    %p31 = scmp.lt.s32.totalorder %s30, 0
    %s32 = scalar_select %p31, %s30, 0
    %s33 = smul.addr %s32, 2
    %s34 = scalar_lea.vmem %s1, %s33
    %s35 = sadd.s32 0, 0
    %p36 = scmp.lt.s32.totalorder %s35, 0
    %s37 = scalar_select %p36, %s35, 0
    %s38 = smul.addr %s37, 2
    %s39 = scalar_lea.vmem %s1, %s38
    %s40 = sadd.s32 0, 0
    %v41 = vld [vmem:[%s39] sm:$0x1]
    %v42 = vld [vmem:[%s39 + $0x1] sm:$0x1]
    %v43 = vlaneseq
    %v44 = vshrl.u32 %v43, 7
    %v45 = vadd.s32 %v44, 8
    %v46 = vadd.s32 %v44, 16
    %v47 = vadd.s32 %v44, 24
    %v48 = vadd.s32 %v44, 32
    %v49 = vadd.s32 %v44, 40
    %v50 = vadd.s32 %v44, 48
    %v51 = vadd.s32 %v44, 56
    %v52 = vadd.s32 %v44, 64
    %v53 = vadd.s32 %v44, 72
    %v54 = vadd.s32 %v44, 80
    %v55 = vadd.s32 %v44, 88
    %v56 = vadd.s32 %v44, 96
    %v57 = vadd.s32 %v44, 104
    %v58 = vadd.s32 %v44, 112
    %v59 = vadd.s32 %v44, 120
    %v60 = vadd.s32 %v44, 128
    %v61 = vadd.s32 %v44, 136
    %v62 = vadd.s32 %v44, 144
    %v63 = vadd.s32 %v44, 152
    %v64 = vadd.s32 %v44, 160
    %v65 = vadd.s32 %v44, 168
    %v66 = vadd.s32 %v44, 176
    %v67 = vadd.s32 %v44, 184
    %v68 = vadd.s32 %v44, 192
    %v69 = vadd.s32 %v44, 200
    %v70 = vadd.s32 %v44, 208
    %v71 = vadd.s32 %v44, 216
    %v72 = vadd.s32 %v44, 224
    %v73 = vadd.s32 %v44, 232
    %v74 = vadd.s32 %v44, 240
    %v75 = vadd.s32 %v44, 248
    %v76 = vlaneseq
    %v77 = vshrl.u32 %v76, 7
    %v78 = vsub.s32 0, %v77
    %v79 = vrot.slane %v41, %v78
    %vm80 = vcmp.eq.s32.totalorder %v44, %v79
    %vm81 = vcmp.eq.s32.totalorder %v45, %v79
    %vm82 = vcmp.eq.s32.totalorder %v46, %v79
    %vm83 = vcmp.eq.s32.totalorder %v47, %v79
    %vm84 = vcmp.eq.s32.totalorder %v48, %v79
    %vm85 = vcmp.eq.s32.totalorder %v49, %v79
    %vm86 = vcmp.eq.s32.totalorder %v50, %v79
    %vm87 = vcmp.eq.s32.totalorder %v51, %v79
    %vm88 = vcmp.eq.s32.totalorder %v52, %v79
    %vm89 = vcmp.eq.s32.totalorder %v53, %v79
    %vm90 = vcmp.eq.s32.totalorder %v54, %v79
    %vm91 = vcmp.eq.s32.totalorder %v55, %v79
    %vm92 = vcmp.eq.s32.totalorder %v56, %v79
    %vm93 = vcmp.eq.s32.totalorder %v57, %v79
    %vm94 = vcmp.eq.s32.totalorder %v58, %v79
    %vm95 = vcmp.eq.s32.totalorder %v59, %v79
    %vm96 = vcmp.eq.s32.totalorder %v60, %v79
    %vm97 = vcmp.eq.s32.totalorder %v61, %v79
    %vm98 = vcmp.eq.s32.totalorder %v62, %v79
    %vm99 = vcmp.eq.s32.totalorder %v63, %v79
    %vm100 = vcmp.eq.s32.totalorder %v64, %v79
    %vm101 = vcmp.eq.s32.totalorder %v65, %v79
    %vm102 = vcmp.eq.s32.totalorder %v66, %v79
    %vm103 = vcmp.eq.s32.totalorder %v67, %v79
    %vm104 = vcmp.eq.s32.totalorder %v68, %v79
    %vm105 = vcmp.eq.s32.totalorder %v69, %v79
    %vm106 = vcmp.eq.s32.totalorder %v70, %v79
    %vm107 = vcmp.eq.s32.totalorder %v71, %v79
    %vm108 = vcmp.eq.s32.totalorder %v72, %v79
    %vm109 = vcmp.eq.s32.totalorder %v73, %v79
    %vm110 = vcmp.eq.s32.totalorder %v74, %v79
    %vm111 = vcmp.eq.s32.totalorder %v75, %v79
    %v112 = vsel %vm80, 1, 0
    %v113 = vsel %vm81, 1, 0
    %v114 = vsel %vm82, 1, 0
    %v115 = vsel %vm83, 1, 0
    %v116 = vsel %vm84, 1, 0
    %v117 = vsel %vm85, 1, 0
    %v118 = vsel %vm86, 1, 0
    %v119 = vsel %vm87, 1, 0
    %v120 = vsel %vm88, 1, 0
    %v121 = vsel %vm89, 1, 0
    %v122 = vsel %vm90, 1, 0
    %v123 = vsel %vm91, 1, 0
    %v124 = vsel %vm92, 1, 0
    %v125 = vsel %vm93, 1, 0
    %v126 = vsel %vm94, 1, 0
    %v127 = vsel %vm95, 1, 0
    %v128 = vsel %vm96, 1, 0
    %v129 = vsel %vm97, 1, 0
    %v130 = vsel %vm98, 1, 0
    %v131 = vsel %vm99, 1, 0
    %v132 = vsel %vm100, 1, 0
    %v133 = vsel %vm101, 1, 0
    %v134 = vsel %vm102, 1, 0
    %v135 = vsel %vm103, 1, 0
    %v136 = vsel %vm104, 1, 0
    %v137 = vsel %vm105, 1, 0
    %v138 = vsel %vm106, 1, 0
    %v139 = vsel %vm107, 1, 0
    %v140 = vsel %vm108, 1, 0
    %v141 = vsel %vm109, 1, 0
    %v142 = vsel %vm110, 1, 0
    %v143 = vsel %vm111, 1, 0
    %v144 = vlaneseq
    %v145 = vshrl.u32 %v144, 7
    %v146 = vsub.s32 0, %v145
    %v147 = vrot.slane %v42, %v146
    %vm148 = vcmp.eq.s32.totalorder %v44, %v147
    %vm149 = vcmp.eq.s32.totalorder %v45, %v147
    %vm150 = vcmp.eq.s32.totalorder %v46, %v147
    %vm151 = vcmp.eq.s32.totalorder %v47, %v147
    %vm152 = vcmp.eq.s32.totalorder %v48, %v147
    %vm153 = vcmp.eq.s32.totalorder %v49, %v147
    %vm154 = vcmp.eq.s32.totalorder %v50, %v147
    %vm155 = vcmp.eq.s32.totalorder %v51, %v147
    %vm156 = vcmp.eq.s32.totalorder %v52, %v147
    %vm157 = vcmp.eq.s32.totalorder %v53, %v147
    %vm158 = vcmp.eq.s32.totalorder %v54, %v147
    %vm159 = vcmp.eq.s32.totalorder %v55, %v147
    %vm160 = vcmp.eq.s32.totalorder %v56, %v147
    %vm161 = vcmp.eq.s32.totalorder %v57, %v147
    %vm162 = vcmp.eq.s32.totalorder %v58, %v147
    %vm163 = vcmp.eq.s32.totalorder %v59, %v147
    %vm164 = vcmp.eq.s32.totalorder %v60, %v147
    %vm165 = vcmp.eq.s32.totalorder %v61, %v147
    %vm166 = vcmp.eq.s32.totalorder %v62, %v147
    %vm167 = vcmp.eq.s32.totalorder %v63, %v147
    %vm168 = vcmp.eq.s32.totalorder %v64, %v147
    %vm169 = vcmp.eq.s32.totalorder %v65, %v147
    %vm170 = vcmp.eq.s32.totalorder %v66, %v147
    %vm171 = vcmp.eq.s32.totalorder %v67, %v147
    %vm172 = vcmp.eq.s32.totalorder %v68, %v147
    %vm173 = vcmp.eq.s32.totalorder %v69, %v147
    %vm174 = vcmp.eq.s32.totalorder %v70, %v147
    %vm175 = vcmp.eq.s32.totalorder %v71, %v147
    %vm176 = vcmp.eq.s32.totalorder %v72, %v147
    %vm177 = vcmp.eq.s32.totalorder %v73, %v147
    %vm178 = vcmp.eq.s32.totalorder %v74, %v147
    %vm179 = vcmp.eq.s32.totalorder %v75, %v147
    %v180 = vsel %vm148, 1, 0
    %v181 = vsel %vm149, 1, 0
    %v182 = vsel %vm150, 1, 0
    %v183 = vsel %vm151, 1, 0
    %v184 = vsel %vm152, 1, 0
    %v185 = vsel %vm153, 1, 0
    %v186 = vsel %vm154, 1, 0
    %v187 = vsel %vm155, 1, 0
    %v188 = vsel %vm156, 1, 0
    %v189 = vsel %vm157, 1, 0
    %v190 = vsel %vm158, 1, 0
    %v191 = vsel %vm159, 1, 0
    %v192 = vsel %vm160, 1, 0
    %v193 = vsel %vm161, 1, 0
    %v194 = vsel %vm162, 1, 0
    %v195 = vsel %vm163, 1, 0
    %v196 = vsel %vm164, 1, 0
    %v197 = vsel %vm165, 1, 0
    %v198 = vsel %vm166, 1, 0
    %v199 = vsel %vm167, 1, 0
    %v200 = vsel %vm168, 1, 0
    %v201 = vsel %vm169, 1, 0
    %v202 = vsel %vm170, 1, 0
    %v203 = vsel %vm171, 1, 0
    %v204 = vsel %vm172, 1, 0
    %v205 = vsel %vm173, 1, 0
    %v206 = vsel %vm174, 1, 0
    %v207 = vsel %vm175, 1, 0
    %v208 = vsel %vm176, 1, 0
    %v209 = vsel %vm177, 1, 0
    %v210 = vsel %vm178, 1, 0
    %v211 = vsel %vm179, 1, 0
    %v212 = vsub.s32 %v112, %v180
    %v213 = vsub.s32 %v113, %v181
    %v214 = vsub.s32 %v114, %v182
    %v215 = vsub.s32 %v115, %v183
    %v216 = vsub.s32 %v116, %v184
    %v217 = vsub.s32 %v117, %v185
    %v218 = vsub.s32 %v118, %v186
    %v219 = vsub.s32 %v119, %v187
    %v220 = vsub.s32 %v120, %v188
    %v221 = vsub.s32 %v121, %v189
    %v222 = vsub.s32 %v122, %v190
    %v223 = vsub.s32 %v123, %v191
    %v224 = vsub.s32 %v124, %v192
    %v225 = vsub.s32 %v125, %v193
    %v226 = vsub.s32 %v126, %v194
    %v227 = vsub.s32 %v127, %v195
    %v228 = vsub.s32 %v128, %v196
    %v229 = vsub.s32 %v129, %v197
    %v230 = vsub.s32 %v130, %v198
    %v231 = vsub.s32 %v131, %v199
    %v232 = vsub.s32 %v132, %v200
    %v233 = vsub.s32 %v133, %v201
    %v234 = vsub.s32 %v134, %v202
    %v235 = vsub.s32 %v135, %v203
    %v236 = vsub.s32 %v136, %v204
    %v237 = vsub.s32 %v137, %v205
    %v238 = vsub.s32 %v138, %v206
    %v239 = vsub.s32 %v139, %v207
    %v240 = vsub.s32 %v140, %v208
    %v241 = vsub.s32 %v141, %v209
    %v242 = vsub.s32 %v142, %v210
    %v243 = vsub.s32 %v143, %v211
    %v244 = vcvt.s32.f32 %v212
    %v245 = vcvt.s32.f32 %v213
    %v246 = vcvt.s32.f32 %v214
    %v247 = vcvt.s32.f32 %v215
    %v248 = vcvt.s32.f32 %v216
    %v249 = vcvt.s32.f32 %v217
    %v250 = vcvt.s32.f32 %v218
    %v251 = vcvt.s32.f32 %v219
    %v252 = vcvt.s32.f32 %v220
    %v253 = vcvt.s32.f32 %v221
    %v254 = vcvt.s32.f32 %v222
    %v255 = vcvt.s32.f32 %v223
    %v256 = vcvt.s32.f32 %v224
    %v257 = vcvt.s32.f32 %v225
    %v258 = vcvt.s32.f32 %v226
    %v259 = vcvt.s32.f32 %v227
    %v260 = vcvt.s32.f32 %v228
    %v261 = vcvt.s32.f32 %v229
    %v262 = vcvt.s32.f32 %v230
    %v263 = vcvt.s32.f32 %v231
    %v264 = vcvt.s32.f32 %v232
    %v265 = vcvt.s32.f32 %v233
    %v266 = vcvt.s32.f32 %v234
    %v267 = vcvt.s32.f32 %v235
    %v268 = vcvt.s32.f32 %v236
    %v269 = vcvt.s32.f32 %v237
    %v270 = vcvt.s32.f32 %v238
    %v271 = vcvt.s32.f32 %v239
    %v272 = vcvt.s32.f32 %v240
    %v273 = vcvt.s32.f32 %v241
    %v274 = vcvt.s32.f32 %v242
    %v275 = vcvt.s32.f32 %v243
    %v276 = vld [vmem:[#allocation2] sm:$0x3]
    %v278 = vlaneseq
    %v279 = vshrl.u32 %v278, 7
    %v280 = vsub.s32 0, %v279
    %v281 = vrot.slane %v276, %v280
    %v282 = vlaneseq
    %v283 = vshrl.u32 %v282, 7
    %v284 = vsub.s32 1, %v283
    %v285 = vrot.slane %v276, %v284
    %288 = vmatprep.subr.mxu0 0.0
    %289 = vmatpush1.msra.mxu0 %v244
    %290 = vmatprep.subr.mxu0 0.0
    %291 = vmatpush1.msra.mxu0 %v245
    %292 = vmatprep.subr.mxu0 0.0
    %293 = vmatpush1.msra.mxu0 %v246
    %294 = vmatprep.subr.mxu0 0.0
    %295 = vmatpush1.msra.mxu0 %v247
    %296 = vmatprep.subr.mxu0 0.0
    %297 = vmatpush1.msra.mxu0 %v248
    %298 = vmatprep.subr.mxu0 0.0
    %299 = vmatpush1.msra.mxu0 %v249
    %300 = vmatprep.subr.mxu0 0.0
    %301 = vmatpush1.msra.mxu0 %v250
    %302 = vmatprep.subr.mxu0 0.0
    %303 = vmatpush1.msra.mxu0 %v251
    %304 = vmatprep.subr.mxu0 0.0
    %305 = vmatpush1.msra.mxu0 %v252
    %306 = vmatprep.subr.mxu0 0.0
    %307 = vmatpush1.msra.mxu0 %v253
    %308 = vmatprep.subr.mxu0 0.0
    %309 = vmatpush1.msra.mxu0 %v254
    %310 = vmatprep.subr.mxu0 0.0
    %311 = vmatpush1.msra.mxu0 %v255
    %312 = vmatprep.subr.mxu0 0.0
    %313 = vmatpush1.msra.mxu0 %v256
    %314 = vmatprep.subr.mxu0 0.0
    %315 = vmatpush1.msra.mxu0 %v257
    %316 = vmatprep.subr.mxu0 0.0
    %317 = vmatpush1.msra.mxu0 %v258
    %318 = vmatprep.subr.mxu0 0.0
    %319 = vmatpush1.msra.mxu0 %v259
    %320 = vmatprep.subr.mxu0 0.0
    %321 = vmatpush1.msra.mxu0 %v260
    %322 = vmatprep.subr.mxu0 0.0
    %323 = vmatpush1.msra.mxu0 %v261
    %324 = vmatprep.subr.mxu0 0.0
    %325 = vmatpush1.msra.mxu0 %v262
    %326 = vmatprep.subr.mxu0 0.0
    %327 = vmatpush1.msra.mxu0 %v263
    %328 = vmatprep.subr.mxu0 0.0
    %329 = vmatpush1.msra.mxu0 %v264
    %330 = vmatprep.subr.mxu0 0.0
    %331 = vmatpush1.msra.mxu0 %v265
    %332 = vmatprep.subr.mxu0 0.0
    %333 = vmatpush1.msra.mxu0 %v266
    %334 = vmatprep.subr.mxu0 0.0
    %335 = vmatpush1.msra.mxu0 %v267
    %336 = vmatprep.subr.mxu0 0.0
    %337 = vmatpush1.msra.mxu0 %v268
    %338 = vmatprep.subr.mxu0 0.0
    %339 = vmatpush1.msra.mxu0 %v269
    %340 = vmatprep.subr.mxu0 0.0
    %341 = vmatpush1.msra.mxu0 %v270
    %342 = vmatprep.subr.mxu0 0.0
    %343 = vmatpush1.msra.mxu0 %v271
    %344 = vmatprep.subr.mxu0 0.0
    %345 = vmatpush1.msra.mxu0 %v272
    %346 = vmatprep.subr.mxu0 0.0
    %347 = vmatpush1.msra.mxu0 %v273
    %348 = vmatprep.subr.mxu0 0.0
    %349 = vmatpush1.msra.mxu0 %v274
    %350 = vmatprep.subr.mxu0 0.0
    %351 = vmatpush1.msra.mxu0 %v275
    %352 = vmatprep.mubr.f32.mxu0 %v285
    %353 = vmatmul.mubr.f32.gmra.mrb[0].mxu0 %v281
    %v354 = vpop.f32.mrb[0].mxu0
    %v355 = vadd.f32 0.0, %v354
    %v356 = vpop.f32.mrb[0].mxu0
    %357 = vdwg.mxu0
    %v358 = vsub.f32 0.0, %v355
    %v359 = vmax.f32 %v358, 0.0
    %v360 = vand.u32 2147483647, %v355
    %v361 = vsub.f32 0.0, %v360
    %v362 = vmul.f32 %v361, 1.442695
    %v363 = vpow.pop %v362
    %v364 = vadd.f32 %v363, 1.0
    %v365 = vlog2.pop %v364
    %v366 = vmul.f32 %v365, 0.6931472
    %v367 = vmul.f32 -0.5, %v363
    %v368 = vadd.f32 %v367, 1.0
    %v369 = vmul.f32 %v368, %v363
    %v370 = vand.u32 2147483647, %v363
    %vm371 = vcmp.lt.f32.partialorder %v370, 0.0004427343
    %v372 = vsel %vm371, %v369, %v366
    %v373 = vadd.f32 %v359, %v372
    %s374 = sadd.s32 0, 0
    %v375 = vlaneseq
    %v376 = vand.u32 %v375, 127
    %s377 = smul.u32 %s374, 128
    %v378 = vstv %s377
    %v379 = vadd.s32 %v378, %v376
    %vm380 = vcmp.lt.s32.totalorder %v379, 8
    %v381 = vsel %vm380, %v373, 0.0
    %p382 = scmp.eq.s32.totalorder 0, 0
    // Predicated region
    $region14: #{tpu_custom_call.1} parent=1 // pred_check
      %p383 = pneg %p382
    $region15: #{tpu_custom_call.1} parent=1 // pred_check_branch
      %385 = sbr.rel (%p383) target = $region17
    $region16: #{tpu_custom_call.1} parent=1 // pred_region
      %386 = vst [vmem:[#allocation5] sm:$0xff] 0.0
    $region17: #{tpu_custom_call.1} parent=1 // pred_fallthru
      _
    %v387 = vld [vmem:[#allocation5] sm:$0xff]
    %vm388 = vcmask 1040384
    %v389 = vsel %vm388, %v381, 0.0
    %390 = vadd.xlane.f32.xlu0 %v389
    %v391 = vpop.xlane.xlu0 %390
    %v392 = vrot.slane %v391, 4
    %v393 = vadd.f32 %v391, %v392
    %v394 = vrot.slane %v393, 2
    %v395 = vadd.f32 %v393, %v394
    %v396 = vrot.slane %v395, 1
    %v397 = vadd.f32 %v395, %v396
    %s398 = vtos %v397
    %v399 = vstv %s398
    %v400 = vadd.f32 %v387, %v399
    %401 = vst [vmem:[#allocation5] sm:$0xff] %v400
    // Predicated region
    $region18: #{tpu_custom_call.1} parent=1 // pred_check
      _
    $region19: #{tpu_custom_call.1} parent=1 // pred_check_branch
      %403 = sbr.rel (0) target = $region21
    $region20: #{tpu_custom_call.1} parent=1 // pred_region
      %s405 = ssub.s32 128, 128
      %406 = vsyncadd [#allocation4], %s405
      %s408 = sshll.u32 [#allocation5], 4
      %s409 = int_to_ptr.vmem [resolvable:$true] %s408
      %411 = dma.vmem_to_hbm [thread:$0]  %s409, 128, %s2, [#allocation4]
    $region21: #{tpu_custom_call.1} parent=1 // pred_fallthru
      _
    // Predicated region
    $region22: #{tpu_custom_call.1} parent=1 // pred_check
      _
    $region23: #{tpu_custom_call.1} parent=1 // pred_check_branch
      %413 = sbr.rel (0) target = $region25
    $region24: #{tpu_custom_call.1} parent=1 // pred_region
      %414 = dma.done [#allocation4], 128
    $region25: #{tpu_custom_call.1} parent=1 // pred_fallthru
      _
    %415 = vsyncpa [#allocation3], 1
    %416 = vsyncpa [#allocation4], 1

</llo_original>
